<compile_context>
chip_gen: v6e
topology: v6e:2x2x1
jax: 0.10.0
libtpu: 0.0.40
codegen_flags: <defaults>
</compile_context>

<pallas_src>
import numpy as np
import jax
import jax.numpy as jnp
from jax.experimental import pallas as pl
from jax.experimental.pallas import tpu as pltpu


# ---------------------------------------------------------------------------
# Host-side parameter setup: shift-folded unitary DFT -> fused real operator
# ---------------------------------------------------------------------------
def shifted_unitary_dft(n):
    """M with  M @ v == fftshift(fft_ortho(ifftshift(v)))  for a length-n vector.
    Correct for odd n too: fftshift rolls floor(n/2), ifftshift rolls ceil(n/2)."""
    idx = np.arange(n)
    F = np.exp(-2j * np.pi * np.outer(idx, idx) / n) / np.sqrt(n)
    row = (idx - n // 2) % n           # fftshift folded into the output rows
    col = (idx + (n + 1) // 2) % n     # ifftshift folded into the input columns
    return F[np.ix_(row, col)]


def build_fused_operator(H, W):
    """GT (2HW, 2HW) f32 such that, for an interleaved-real row vector
    x2 = [re0, im0, re1, im1, ...] (row-major over (H, W)),
        x2 @ GT  ==  interleave(fftshift(fft2_ortho(ifftshift(X)))).
    G is the real representation of F2 = kron(M_H, M_W); no Karatsuba, no cancellation.
    """
    MH = shifted_unitary_dft(H)
    MW = shifted_unitary_dft(W)
    F2 = np.kron(MH, MW)                       # complex (HW, HW):  y_flat = F2 @ x_flat
    K = H * W
    G = np.empty((2 * K, 2 * K), np.float64)
    G[0::2, 0::2] = F2.real
    G[0::2, 1::2] = -F2.imag
    G[1::2, 0::2] = F2.imag
    G[1::2, 1::2] = F2.real
    return jnp.asarray(np.ascontiguousarray(G.T), dtype=jnp.float32)


# ---------------------------------------------------------------------------
# VMEM-aware sizing (generation specific: 128 MiB on v5e/v6e, 64 MiB on v7x)
# ---------------------------------------------------------------------------
def _pad_to(a, m):
    return -(-a // m) * m


def _tile_bytes(rows, cols):
    # f32 tile padded to the (8, 128) vreg footprint
    return _pad_to(rows, 8) * _pad_to(cols, 128) * 4


def _vmem_config():
    """(vmem_limit_bytes, chooser_budget_bytes, min_grid) per TPU generation."""
    cap = None
    try:
        cap = getattr(pltpu.get_tpu_info(), "vmem_capacity_bytes", None)
    except Exception:
        cap = None
    if cap is not None and cap >= 100 * 1024 * 1024:
        # v4 / v5e / v5p / v6e: 128 MiB physical VMEM -> use most of it.
        limit, min_grid = 96 * 1024 * 1024, 1
    else:
        # v7x (64 MiB physical) or unknown: stay conservative and prefer >= 2 grid
        # steps so both TensorCores get work under dimension_semantics="parallel".
        limit, min_grid = 48 * 1024 * 1024, 2
    return limit, int(limit * 0.7), min_grid


def choose_plane_block(N, K2, block_budget, min_grid=1):
    """Largest NB (divisor of N, and a multiple of 8 or == N so the (NB, K2) block is
    (8,128)-legal) whose pipelined working set fits `block_budget`; optionally capped so
    the grid has >= `min_grid` steps (v7x TensorCore balance)."""
    def need(nb):
        # x / mask / out blocks double-buffered by the pipeline (3*2) + ~2 temporaries.
        return 8 * _tile_bytes(nb, K2)

    cands = [d for d in range(1, N + 1) if N % d == 0 and (d % 8 == 0 or d == N)]
    fitting = [d for d in cands if need(d) <= block_budget] or [min(cands)]
    nb = max(fitting)
    while min_grid > 1 and N // nb < min_grid:
        smaller = [d for d in fitting if d < nb]
        if not smaller:
            break
        nb = max(smaller)
    return nb


# ---------------------------------------------------------------------------
# Fused kernel: shifted unitary 2-D DFT (one real matmul) + sampling mask.
# One grid step = one block of NB complex planes, flattened & re/im-interleaved.
# ---------------------------------------------------------------------------
def sense_fused_kernel(x_ref, g_ref, m_ref, y_ref):
    # x_ref: (NB, 2HW) interleaved re/im rows; g_ref: (2HW, 2HW) real-augmented
    # shift-folded DFT operator (transposed, for right-multiplication);
    # m_ref: (NB, 2HW) per-plane mask; y_ref: (NB, 2HW) output (lane-dense stores).
    y = jnp.dot(x_ref[...], g_ref[...], preferred_element_type=jnp.float32)
    y_ref[...] = y * m_ref[...]


# ---------------------------------------------------------------------------
# Wrapper (pure layout plumbing; the flatten/unflatten reshapes are zero-copy)
# ---------------------------------------------------------------------------
def simple_sense_forward(x, mask, gt, *, use_bf16_operands=False, plane_block=None):
    """Pallas implementation of SimpleSenseModel.forward.

    x:    (B, C, H, W, 2) f32  -- real/imag pairs (old torch.fft layout)
    mask: (B, H, W)       f32
    gt:   (2*H*W, 2*H*W)  f32  -- from build_fused_operator(H, W)
    returns (B, C, H, W, 2) f32
    """
    B, C, H, W, two = x.shape
    assert two == 2 and mask.shape == (B, H, W)
    N = B * C
    K2 = 2 * H * W
    assert gt.shape == (K2, K2)

    vmem_limit, vmem_budget, min_grid = _vmem_config()
    g_resident = 2 * _tile_bytes(K2, K2)       # constant operator, double-buffered
    if g_resident > vmem_budget:
        # TODO(synk): separable M_H @ X @ M_W^T path for large H*W (fused operator
        # exceeds VMEM); not required at these shapes.
        raise NotImplementedError("H*W too large for the fused-operator path")

    if plane_block is None:
        NB = choose_plane_block(N, K2, vmem_budget - g_resident, min_grid)
    else:
        NB = plane_block
    assert N % NB == 0

    # Zero-copy flatten: (B, C, H, W, 2) row-major == (N, 2HW) with interleaved re/im.
    x2 = x.astype(jnp.float32).reshape(N, K2)
    # Mask expanded to one row per plane (re/im duplicated) so blocks may straddle
    # batch elements.  (At production sizes a compact (B, 2HW) mask + a divides-C
    # constraint halves the mask read traffic; irrelevant at this scale.)
    m2 = jnp.broadcast_to(mask.astype(jnp.float32)[:, None, :, :, None],
                          (B, C, H, W, 2)).reshape(N, K2)

    if use_bf16_operands:          # v6e/v7x option: ~3x MXU rate, accumulation stays f32
        x2 = x2.astype(jnp.bfloat16)
        gt = gt.astype(jnp.bfloat16)

    plane_spec = pl.BlockSpec((NB, K2), lambda j: (j, 0))
    op_spec = pl.BlockSpec((K2, K2), lambda j: (0, 0))   # constant block index ->
    # the pipeline fetches it once and never re-DMAs it (the chooser still budgets
    # for its two buffers).

    y2 = pl.pallas_call(
        sense_fused_kernel,
        out_shape=jax.ShapeDtypeStruct((N, K2), jnp.float32),
        grid=(N // NB,),
        in_specs=[plane_spec, op_spec, plane_spec],
        out_specs=plane_spec,
        compiler_params=pltpu.CompilerParams(
            dimension_semantics=("parallel",),   # plane blocks are independent
            vmem_limit_bytes=vmem_limit),
    )(x2, gt, m2)

    # Zero-copy unflatten back to the module's (B, C, H, W, 2) layout.
    return y2.reshape(B, C, H, W, 2)


# ---------------------------------------------------------------------------
# Pure numpy reference (matches the PyTorch semantics exactly)
# ---------------------------------------------------------------------------
def reference_numpy(x, mask):
    xc = x[..., 0] + 1j * x[..., 1]
    xc = np.fft.ifftshift(xc, axes=(-2, -1))               # torch_ifftshift (H, W axes)
    y = np.fft.fft2(xc, axes=(-2, -1), norm="ortho")       # torch.fft(2, normalized=True)
    y = np.fft.fftshift(y, axes=(-2, -1))                  # torch_fftshift
    y = y * mask[:, None, :, :]                            # mask_forw
    return np.stack([y.real, y.imag], axis=-1).astype(np.float32)


if __name__ == "__main__":
    B, C, H, W = 2, 4, 16, 16
    key = jax.random.PRNGKey(0)
    kx, km = jax.random.split(key)
    x = jax.random.normal(kx, (B, C, H, W, 2), dtype=jnp.float32)
    mask = (jax.random.uniform(km, (B, H, W)) > 0.5).astype(jnp.float32)

    gt = build_fused_operator(H, W)
    out = jax.block_until_ready(simple_sense_forward(x, mask, gt))

    ref = reference_numpy(np.asarray(x), np.asarray(mask))
    np.testing.assert_allclose(np.asarray(out), ref, rtol=1e-3, atol=1e-4)

    print("KERNEL_OK")
</pallas_src>

<mosaic_0001>
module attributes {stable_mosaic.version = 11 : i64} {
  func.func @sense_fused_kernel(%arg0: i32, %arg1: memref<8x512xf32, #tpu.memory_space<vmem>>, %arg2: memref<512x512xf32, #tpu.memory_space<vmem>>, %arg3: memref<8x512xf32, #tpu.memory_space<vmem>>, %arg4: memref<8x512xf32, #tpu.memory_space<vmem>>) attributes {dimension_semantics = [#tpu.dimension_semantics<parallel>], iteration_bounds = array<i64: 1>, scalar_prefetch = 0 : i64, scratch_operands = 0 : i64, tpu.core_type = #tpu.core_type<tc>, window_params = [{transform_indices = @transform_0, window_bounds = array<i64: 8, 512>}, {pipeline_mode = #tpu.pipeline_mode<synchronous>, transform_indices = @transform_1, window_bounds = array<i64: 512, 512>}, {transform_indices = @transform_2, window_bounds = array<i64: 8, 512>}, {transform_indices = @transform_3, window_bounds = array<i64: 8, 512>}]} {
    %c0 = arith.constant 0 : index
    %c0_0 = arith.constant 0 : index
    %0 = vector.load %arg1[%c0, %c0_0] : memref<8x512xf32, #tpu.memory_space<vmem>>, vector<8x512xf32>
    %c0_1 = arith.constant 0 : index
    %c0_2 = arith.constant 0 : index
    %1 = vector.load %arg2[%c0_1, %c0_2] : memref<512x512xf32, #tpu.memory_space<vmem>>, vector<512x512xf32>
    %cst = arith.constant dense<0.000000e+00> : vector<8x512xf32>
    %2 = tpu.matmul %0, %1, %cst {dimension_numbers = #tpu.dot_dimension_numbers<[1], [0], [0], [1], [0, 0, 1, 1], [], []>} : vector<8x512xf32>, vector<512x512xf32>, vector<8x512xf32> -> vector<8x512xf32>
    %c0_3 = arith.constant 0 : index
    %c0_4 = arith.constant 0 : index
    %3 = vector.load %arg3[%c0_3, %c0_4] : memref<8x512xf32, #tpu.memory_space<vmem>>, vector<8x512xf32>
    %4 = arith.mulf %2, %3 : vector<8x512xf32>
    %c0_5 = arith.constant 0 : index
    %c0_6 = arith.constant 0 : index
    %5 = vector.load %arg4[%c0_5, %c0_6] : memref<8x512xf32, #tpu.memory_space<vmem>>, vector<8x512xf32>
    tpu.vector_store %arg4[%c0_5, %c0_6], %4 {strides = array<i32>} : memref<8x512xf32, #tpu.memory_space<vmem>>, vector<8x512xf32>,
    return
  }
  func.func @transform_0(%arg0: i32) -> (i32, i32) {
    %c0_i32 = arith.constant 0 : i32
    %c0_i32_0 = arith.constant 0 : i32
    return %arg0, %c0_i32 : i32, i32
  }
  func.func @transform_1(%arg0: i32) -> (i32, i32) {
    %c0_i32 = arith.constant 0 : i32
    %c0_i32_0 = arith.constant 0 : i32
    %c0_i32_1 = arith.constant 0 : i32
    return %c0_i32, %c0_i32_0 : i32, i32
  }
  func.func @transform_2(%arg0: i32) -> (i32, i32) {
    %c0_i32 = arith.constant 0 : i32
    %c0_i32_0 = arith.constant 0 : i32
    return %arg0, %c0_i32 : i32, i32
  }
  func.func @transform_3(%arg0: i32) -> (i32, i32) {
    %c0_i32 = arith.constant 0 : i32
    %c0_i32_0 = arith.constant 0 : i32
    return %arg0, %c0_i32 : i32, i32
  }
}

</mosaic_0001>

<llo_original>
// kernel: tpu_custom_call.1
$region0: #{tpu_custom_call.1}
  #allocation0 [shape = 'u32[]', space=smem, size = 0x4, offset = 0x4, fixed_abs, tag = 'smem constant byte address 0x4 - core index']
  #allocation1 [shape = 'u32[144,128]{1,0:T(1,128)}', space=vmem, size = 0x12000, scoped, tag = 'internal scratch']
  %s0 = inlined_call_operand.hbm [shape: f32[8,512], index: 0, kind: input, shape index: {}]
  %s1 = inlined_call_operand.hbm [shape: f32[512,512], index: 1, kind: input, shape index: {}]
  %s2 = inlined_call_operand.hbm [shape: f32[8,512], index: 2, kind: input, shape index: {}]
  %s3 = inlined_call_operand.hbm [shape: f32[8,512], index: 3, kind: output, shape index: {}]
  %s4 = sld [smem:[#allocation0]]
  $region34: #{tpu_custom_call.1} parent=0
    _
  %s6 = ssub.s32 1, %s4
  %s7 = scalar_select 0, %s6, %s4
  $region1: #{tpu_custom_call.1} parent=0
    #allocation2 [shape = 'u8[16384]{0}', space=vmem, size = 0x4000, scoped, tag = 'input window, operand 0, single buffered']
    #allocation3 [shape = 's32[1]{0}', space=sflag, size = 0x4, scoped, tag = 'scoped memory for tpu_custom_call.1']
    #allocation4 [shape = 's32[1]{0}', space=sflag, size = 0x4, scoped, tag = 'scoped memory for tpu_custom_call.1']
    #allocation5 [shape = 'u8[1048576]{0}', space=vmem, size = 0x100000, scoped, tag = 'input window, operand 1, single buffered']
    #allocation6 [shape = 's32[1]{0}', space=sflag, size = 0x4, scoped, tag = 'scoped memory for tpu_custom_call.1']
    #allocation7 [shape = 'u8[16384]{0}', space=vmem, size = 0x4000, scoped, tag = 'input window, operand 2, single buffered']
    #allocation8 [shape = 'u8[16384]{0}', space=vmem, size = 0x4000, scoped, tag = 'output window, operand 0, single buffered']
    %8 = vsyncpa [#allocation3], 0
    %9 = vsyncpa [#allocation6], 0
    %10 = vsyncpa [#allocation4], 0
    // Predicated region
    $region2: #{tpu_custom_call.1} parent=1 // pred_check
      _
    $region3: #{tpu_custom_call.1} parent=1 // pred_check_branch
      %12 = sbr.rel (0) target = $region5
    $region4: #{tpu_custom_call.1} parent=1 // pred_region
      %s14 = ssub.s32 512, 512
      %15 = vsyncadd [#allocation3], %s14
      %s17 = sshll.u32 [#allocation2], 4
      %s18 = int_to_ptr.vmem [resolvable:$true] %s17
      %20 = dma.hbm_to_vmem [thread:$0]  %s0, 512, %s18, [#allocation3]
    $region5: #{tpu_custom_call.1} parent=1 // pred_fallthru
      _
    // Predicated region
    $region6: #{tpu_custom_call.1} parent=1 // pred_check
      _
    $region7: #{tpu_custom_call.1} parent=1 // pred_check_branch
      %22 = sbr.rel (0) target = $region9
    $region8: #{tpu_custom_call.1} parent=1 // pred_region
      %s24 = ssub.s32 32768, 32768
      %25 = vsyncadd [#allocation6], %s24
      %s26 = sshll.u32 [#allocation5], 4
      %s27 = int_to_ptr.vmem [resolvable:$true] %s26
      %32 = dma.hbm_to_vmem [thread:$0]  %s1, 32768, %s27, [#allocation6], 512, 512, 32
    $region9: #{tpu_custom_call.1} parent=1 // pred_fallthru
      _
    // Predicated region
    $region10: #{tpu_custom_call.1} parent=1 // pred_check
      _
    $region11: #{tpu_custom_call.1} parent=1 // pred_check_branch
      %34 = sbr.rel (0) target = $region13
    $region12: #{tpu_custom_call.1} parent=1 // pred_region
      %s36 = ssub.s32 512, 512
      %37 = vsyncadd [#allocation6], %s36
      %s39 = sshll.u32 [#allocation7], 4
      %s40 = int_to_ptr.vmem [resolvable:$true] %s39
      %42 = dma.hbm_to_vmem [thread:$0]  %s2, 512, %s40, [#allocation6]
    $region13: #{tpu_custom_call.1} parent=1 // pred_fallthru
      _
    // Predicated region
    $region14: #{tpu_custom_call.1} parent=1 // pred_check
      _
    $region15: #{tpu_custom_call.1} parent=1 // pred_check_branch
      %44 = sbr.rel (0) target = $region17
    $region16: #{tpu_custom_call.1} parent=1 // pred_region
      %45 = dma.done [#allocation3], 512
    $region17: #{tpu_custom_call.1} parent=1 // pred_fallthru
      _
    // Predicated region
    $region18: #{tpu_custom_call.1} parent=1 // pred_check
      _
    $region19: #{tpu_custom_call.1} parent=1 // pred_check_branch
      %47 = sbr.rel (0) target = $region21
    $region20: #{tpu_custom_call.1} parent=1 // pred_region
      %48 = dma.done [#allocation6], 32768
    $region21: #{tpu_custom_call.1} parent=1 // pred_fallthru
      _
    // Predicated region
    $region22: #{tpu_custom_call.1} parent=1 // pred_check
      _
    $region23: #{tpu_custom_call.1} parent=1 // pred_check_branch
      %50 = sbr.rel (0) target = $region25
    $region24: #{tpu_custom_call.1} parent=1 // pred_region
      %51 = dma.done [#allocation6], 512
    $region25: #{tpu_custom_call.1} parent=1 // pred_fallthru
      _
    %v52 = vld [vmem:[#allocation2] sm:$0xff]
    %v53 = vld [vmem:[#allocation2 + $0x8] sm:$0xff]
    %v54 = vld [vmem:[#allocation2 + $0x10] sm:$0xff]
    %v55 = vld [vmem:[#allocation2 + $0x18] sm:$0xff]
    %v56 = vld [vmem:[#allocation5] sm:$0xff]
    %v57 = vld [vmem:[#allocation5 + $0x8] sm:$0xff]
    %v58 = vld [vmem:[#allocation5 + $0x10] sm:$0xff]
    %v59 = vld [vmem:[#allocation5 + $0x18] sm:$0xff]
    %v60 = vld [vmem:[#allocation5 + $0x20] sm:$0xff]
    %v61 = vld [vmem:[#allocation5 + $0x28] sm:$0xff]
    %v62 = vld [vmem:[#allocation5 + $0x30] sm:$0xff]
    %v63 = vld [vmem:[#allocation5 + $0x38] sm:$0xff]
    %v64 = vld [vmem:[#allocation5 + $0x40] sm:$0xff]
    %v65 = vld [vmem:[#allocation5 + $0x48] sm:$0xff]
    %v66 = vld [vmem:[#allocation5 + $0x50] sm:$0xff]
    %v67 = vld [vmem:[#allocation5 + $0x58] sm:$0xff]
    %v68 = vld [vmem:[#allocation5 + $0x60] sm:$0xff]
    %v69 = vld [vmem:[#allocation5 + $0x68] sm:$0xff]
    %v70 = vld [vmem:[#allocation5 + $0x70] sm:$0xff]
    %v71 = vld [vmem:[#allocation5 + $0x78] sm:$0xff]
    %v72 = vld [vmem:[#allocation5 + $0x80] sm:$0xff]
    %v73 = vld [vmem:[#allocation5 + $0x88] sm:$0xff]
    %v74 = vld [vmem:[#allocation5 + $0x90] sm:$0xff]
    %v75 = vld [vmem:[#allocation5 + $0x98] sm:$0xff]
    %v76 = vld [vmem:[#allocation5 + $0xa0] sm:$0xff]
    %v77 = vld [vmem:[#allocation5 + $0xa8] sm:$0xff]
    %v78 = vld [vmem:[#allocation5 + $0xb0] sm:$0xff]
    %v79 = vld [vmem:[#allocation5 + $0xb8] sm:$0xff]
    %v80 = vld [vmem:[#allocation5 + $0xc0] sm:$0xff]
    %v81 = vld [vmem:[#allocation5 + $0xc8] sm:$0xff]
    %v82 = vld [vmem:[#allocation5 + $0xd0] sm:$0xff]
    %v83 = vld [vmem:[#allocation5 + $0xd8] sm:$0xff]
    %v84 = vld [vmem:[#allocation5 + $0xe0] sm:$0xff]
    %v85 = vld [vmem:[#allocation5 + $0xe8] sm:$0xff]
    %v86 = vld [vmem:[#allocation5 + $0xf0] sm:$0xff]
    %v87 = vld [vmem:[#allocation5 + $0xf8] sm:$0xff]
    %v88 = vld [vmem:[#allocation5 + $0x100] sm:$0xff]
    %v89 = vld [vmem:[#allocation5 + $0x108] sm:$0xff]
    %v90 = vld [vmem:[#allocation5 + $0x110] sm:$0xff]
    %v91 = vld [vmem:[#allocation5 + $0x118] sm:$0xff]
    %v92 = vld [vmem:[#allocation5 + $0x120] sm:$0xff]
    %v93 = vld [vmem:[#allocation5 + $0x128] sm:$0xff]
    %v94 = vld [vmem:[#allocation5 + $0x130] sm:$0xff]
    %v95 = vld [vmem:[#allocation5 + $0x138] sm:$0xff]
    %v96 = vld [vmem:[#allocation5 + $0x140] sm:$0xff]
    %v97 = vld [vmem:[#allocation5 + $0x148] sm:$0xff]
    %v98 = vld [vmem:[#allocation5 + $0x150] sm:$0xff]
    %v99 = vld [vmem:[#allocation5 + $0x158] sm:$0xff]
    %v100 = vld [vmem:[#allocation5 + $0x160] sm:$0xff]
    %v101 = vld [vmem:[#allocation5 + $0x168] sm:$0xff]
    %v102 = vld [vmem:[#allocation5 + $0x170] sm:$0xff]
    %v103 = vld [vmem:[#allocation5 + $0x178] sm:$0xff]
    %v104 = vld [vmem:[#allocation5 + $0x180] sm:$0xff]
    %v105 = vld [vmem:[#allocation5 + $0x188] sm:$0xff]
    %v106 = vld [vmem:[#allocation5 + $0x190] sm:$0xff]
    %v107 = vld [vmem:[#allocation5 + $0x198] sm:$0xff]
    %v108 = vld [vmem:[#allocation5 + $0x1a0] sm:$0xff]
    %v109 = vld [vmem:[#allocation5 + $0x1a8] sm:$0xff]
    %v110 = vld [vmem:[#allocation5 + $0x1b0] sm:$0xff]
    %v111 = vld [vmem:[#allocation5 + $0x1b8] sm:$0xff]
    %v112 = vld [vmem:[#allocation5 + $0x1c0] sm:$0xff]
    %v113 = vld [vmem:[#allocation5 + $0x1c8] sm:$0xff]
    %v114 = vld [vmem:[#allocation5 + $0x1d0] sm:$0xff]
    %v115 = vld [vmem:[#allocation5 + $0x1d8] sm:$0xff]
    %v116 = vld [vmem:[#allocation5 + $0x1e0] sm:$0xff]
    %v117 = vld [vmem:[#allocation5 + $0x1e8] sm:$0xff]
    %v118 = vld [vmem:[#allocation5 + $0x1f0] sm:$0xff]
    %v119 = vld [vmem:[#allocation5 + $0x1f8] sm:$0xff]
    %v120 = vld [vmem:[#allocation5 + $0x200] sm:$0xff]
    %v121 = vld [vmem:[#allocation5 + $0x208] sm:$0xff]
    %v122 = vld [vmem:[#allocation5 + $0x210] sm:$0xff]
    %v123 = vld [vmem:[#allocation5 + $0x218] sm:$0xff]
    %v124 = vld [vmem:[#allocation5 + $0x220] sm:$0xff]
    %v125 = vld [vmem:[#allocation5 + $0x228] sm:$0xff]
    %v126 = vld [vmem:[#allocation5 + $0x230] sm:$0xff]
    %v127 = vld [vmem:[#allocation5 + $0x238] sm:$0xff]
    %v128 = vld [vmem:[#allocation5 + $0x240] sm:$0xff]
    %v129 = vld [vmem:[#allocation5 + $0x248] sm:$0xff]
    %v130 = vld [vmem:[#allocation5 + $0x250] sm:$0xff]
    %v131 = vld [vmem:[#allocation5 + $0x258] sm:$0xff]
    %v132 = vld [vmem:[#allocation5 + $0x260] sm:$0xff]
    %v133 = vld [vmem:[#allocation5 + $0x268] sm:$0xff]
    %v134 = vld [vmem:[#allocation5 + $0x270] sm:$0xff]
    %v135 = vld [vmem:[#allocation5 + $0x278] sm:$0xff]
    %v136 = vld [vmem:[#allocation5 + $0x280] sm:$0xff]
    %v137 = vld [vmem:[#allocation5 + $0x288] sm:$0xff]
    %v138 = vld [vmem:[#allocation5 + $0x290] sm:$0xff]
    %v139 = vld [vmem:[#allocation5 + $0x298] sm:$0xff]
    %v140 = vld [vmem:[#allocation5 + $0x2a0] sm:$0xff]
    %v141 = vld [vmem:[#allocation5 + $0x2a8] sm:$0xff]
    %v142 = vld [vmem:[#allocation5 + $0x2b0] sm:$0xff]
    %v143 = vld [vmem:[#allocation5 + $0x2b8] sm:$0xff]
    %v144 = vld [vmem:[#allocation5 + $0x2c0] sm:$0xff]
    %v145 = vld [vmem:[#allocation5 + $0x2c8] sm:$0xff]
    %v146 = vld [vmem:[#allocation5 + $0x2d0] sm:$0xff]
    %v147 = vld [vmem:[#allocation5 + $0x2d8] sm:$0xff]
    %v148 = vld [vmem:[#allocation5 + $0x2e0] sm:$0xff]
    %v149 = vld [vmem:[#allocation5 + $0x2e8] sm:$0xff]
    %v150 = vld [vmem:[#allocation5 + $0x2f0] sm:$0xff]
    %v151 = vld [vmem:[#allocation5 + $0x2f8] sm:$0xff]
    %v152 = vld [vmem:[#allocation5 + $0x300] sm:$0xff]
    %v153 = vld [vmem:[#allocation5 + $0x308] sm:$0xff]
    %v154 = vld [vmem:[#allocation5 + $0x310] sm:$0xff]
    %v155 = vld [vmem:[#allocation5 + $0x318] sm:$0xff]
    %v156 = vld [vmem:[#allocation5 + $0x320] sm:$0xff]
    %v157 = vld [vmem:[#allocation5 + $0x328] sm:$0xff]
    %v158 = vld [vmem:[#allocation5 + $0x330] sm:$0xff]
    %v159 = vld [vmem:[#allocation5 + $0x338] sm:$0xff]
    %v160 = vld [vmem:[#allocation5 + $0x340] sm:$0xff]
    %v161 = vld [vmem:[#allocation5 + $0x348] sm:$0xff]
    %v162 = vld [vmem:[#allocation5 + $0x350] sm:$0xff]
    %v163 = vld [vmem:[#allocation5 + $0x358] sm:$0xff]
    %v164 = vld [vmem:[#allocation5 + $0x360] sm:$0xff]
    %v165 = vld [vmem:[#allocation5 + $0x368] sm:$0xff]
    %v166 = vld [vmem:[#allocation5 + $0x370] sm:$0xff]
    %v167 = vld [vmem:[#allocation5 + $0x378] sm:$0xff]
    %v168 = vld [vmem:[#allocation5 + $0x380] sm:$0xff]
    %v169 = vld [vmem:[#allocation5 + $0x388] sm:$0xff]
    %v170 = vld [vmem:[#allocation5 + $0x390] sm:$0xff]
    %v171 = vld [vmem:[#allocation5 + $0x398] sm:$0xff]
    %v172 = vld [vmem:[#allocation5 + $0x3a0] sm:$0xff]
    %v173 = vld [vmem:[#allocation5 + $0x3a8] sm:$0xff]
    %v174 = vld [vmem:[#allocation5 + $0x3b0] sm:$0xff]
    %v175 = vld [vmem:[#allocation5 + $0x3b8] sm:$0xff]
    %v176 = vld [vmem:[#allocation5 + $0x3c0] sm:$0xff]
    %v177 = vld [vmem:[#allocation5 + $0x3c8] sm:$0xff]
    %v178 = vld [vmem:[#allocation5 + $0x3d0] sm:$0xff]
    %v179 = vld [vmem:[#allocation5 + $0x3d8] sm:$0xff]
    %v180 = vld [vmem:[#allocation5 + $0x3e0] sm:$0xff]
    %v181 = vld [vmem:[#allocation5 + $0x3e8] sm:$0xff]
    %v182 = vld [vmem:[#allocation5 + $0x3f0] sm:$0xff]
    %v183 = vld [vmem:[#allocation5 + $0x3f8] sm:$0xff]
    %v184 = vld [vmem:[#allocation5 + $0x400] sm:$0xff]
    %v185 = vld [vmem:[#allocation5 + $0x408] sm:$0xff]
    %v186 = vld [vmem:[#allocation5 + $0x410] sm:$0xff]
    %v187 = vld [vmem:[#allocation5 + $0x418] sm:$0xff]
    %v188 = vld [vmem:[#allocation5 + $0x420] sm:$0xff]
    %v189 = vld [vmem:[#allocation5 + $0x428] sm:$0xff]
    %v190 = vld [vmem:[#allocation5 + $0x430] sm:$0xff]
    %v191 = vld [vmem:[#allocation5 + $0x438] sm:$0xff]
    %v192 = vld [vmem:[#allocation5 + $0x440] sm:$0xff]
    %v193 = vld [vmem:[#allocation5 + $0x448] sm:$0xff]
    %v194 = vld [vmem:[#allocation5 + $0x450] sm:$0xff]
    %v195 = vld [vmem:[#allocation5 + $0x458] sm:$0xff]
    %v196 = vld [vmem:[#allocation5 + $0x460] sm:$0xff]
    %v197 = vld [vmem:[#allocation5 + $0x468] sm:$0xff]
    %v198 = vld [vmem:[#allocation5 + $0x470] sm:$0xff]
    %v199 = vld [vmem:[#allocation5 + $0x478] sm:$0xff]
    %v200 = vld [vmem:[#allocation5 + $0x480] sm:$0xff]
    %v201 = vld [vmem:[#allocation5 + $0x488] sm:$0xff]
    %v202 = vld [vmem:[#allocation5 + $0x490] sm:$0xff]
    %v203 = vld [vmem:[#allocation5 + $0x498] sm:$0xff]
    %v204 = vld [vmem:[#allocation5 + $0x4a0] sm:$0xff]
    %v205 = vld [vmem:[#allocation5 + $0x4a8] sm:$0xff]
    %v206 = vld [vmem:[#allocation5 + $0x4b0] sm:$0xff]
    %v207 = vld [vmem:[#allocation5 + $0x4b8] sm:$0xff]
    %v208 = vld [vmem:[#allocation5 + $0x4c0] sm:$0xff]
    %v209 = vld [vmem:[#allocation5 + $0x4c8] sm:$0xff]
    %v210 = vld [vmem:[#allocation5 + $0x4d0] sm:$0xff]
    %v211 = vld [vmem:[#allocation5 + $0x4d8] sm:$0xff]
    %v212 = vld [vmem:[#allocation5 + $0x4e0] sm:$0xff]
    %v213 = vld [vmem:[#allocation5 + $0x4e8] sm:$0xff]
    %v214 = vld [vmem:[#allocation5 + $0x4f0] sm:$0xff]
    %v215 = vld [vmem:[#allocation5 + $0x4f8] sm:$0xff]
    %v216 = vld [vmem:[#allocation5 + $0x500] sm:$0xff]
    %v217 = vld [vmem:[#allocation5 + $0x508] sm:$0xff]
    %v218 = vld [vmem:[#allocation5 + $0x510] sm:$0xff]
    %v219 = vld [vmem:[#allocation5 + $0x518] sm:$0xff]
    %v220 = vld [vmem:[#allocation5 + $0x520] sm:$0xff]
    %v221 = vld [vmem:[#allocation5 + $0x528] sm:$0xff]
    %v222 = vld [vmem:[#allocation5 + $0x530] sm:$0xff]
    %v223 = vld [vmem:[#allocation5 + $0x538] sm:$0xff]
    %v224 = vld [vmem:[#allocation5 + $0x540] sm:$0xff]
    %v225 = vld [vmem:[#allocation5 + $0x548] sm:$0xff]
    %v226 = vld [vmem:[#allocation5 + $0x550] sm:$0xff]
    %v227 = vld [vmem:[#allocation5 + $0x558] sm:$0xff]
    %v228 = vld [vmem:[#allocation5 + $0x560] sm:$0xff]
    %v229 = vld [vmem:[#allocation5 + $0x568] sm:$0xff]
    %v230 = vld [vmem:[#allocation5 + $0x570] sm:$0xff]
    %v231 = vld [vmem:[#allocation5 + $0x578] sm:$0xff]
    %v232 = vld [vmem:[#allocation5 + $0x580] sm:$0xff]
    %v233 = vld [vmem:[#allocation5 + $0x588] sm:$0xff]
    %v234 = vld [vmem:[#allocation5 + $0x590] sm:$0xff]
    %v235 = vld [vmem:[#allocation5 + $0x598] sm:$0xff]
    %v236 = vld [vmem:[#allocation5 + $0x5a0] sm:$0xff]
    %v237 = vld [vmem:[#allocation5 + $0x5a8] sm:$0xff]
    %v238 = vld [vmem:[#allocation5 + $0x5b0] sm:$0xff]
    %v239 = vld [vmem:[#allocation5 + $0x5b8] sm:$0xff]
    %v240 = vld [vmem:[#allocation5 + $0x5c0] sm:$0xff]
    %v241 = vld [vmem:[#allocation5 + $0x5c8] sm:$0xff]
    %v242 = vld [vmem:[#allocation5 + $0x5d0] sm:$0xff]
    %v243 = vld [vmem:[#allocation5 + $0x5d8] sm:$0xff]
    %v244 = vld [vmem:[#allocation5 + $0x5e0] sm:$0xff]
    %v245 = vld [vmem:[#allocation5 + $0x5e8] sm:$0xff]
    %v246 = vld [vmem:[#allocation5 + $0x5f0] sm:$0xff]
    %v247 = vld [vmem:[#allocation5 + $0x5f8] sm:$0xff]
    %v248 = vld [vmem:[#allocation5 + $0x600] sm:$0xff]
    %v249 = vld [vmem:[#allocation5 + $0x608] sm:$0xff]
    %v250 = vld [vmem:[#allocation5 + $0x610] sm:$0xff]
    %v251 = vld [vmem:[#allocation5 + $0x618] sm:$0xff]
    %v252 = vld [vmem:[#allocation5 + $0x620] sm:$0xff]
    %v253 = vld [vmem:[#allocation5 + $0x628] sm:$0xff]
    %v254 = vld [vmem:[#allocation5 + $0x630] sm:$0xff]
    %v255 = vld [vmem:[#allocation5 + $0x638] sm:$0xff]
    %v256 = vld [vmem:[#allocation5 + $0x640] sm:$0xff]
    %v257 = vld [vmem:[#allocation5 + $0x648] sm:$0xff]
    %v258 = vld [vmem:[#allocation5 + $0x650] sm:$0xff]
    %v259 = vld [vmem:[#allocation5 + $0x658] sm:$0xff]
    %v260 = vld [vmem:[#allocation5 + $0x660] sm:$0xff]
    %v261 = vld [vmem:[#allocation5 + $0x668] sm:$0xff]
    %v262 = vld [vmem:[#allocation5 + $0x670] sm:$0xff]
    %v263 = vld [vmem:[#allocation5 + $0x678] sm:$0xff]
    %v264 = vld [vmem:[#allocation5 + $0x680] sm:$0xff]
    %v265 = vld [vmem:[#allocation5 + $0x688] sm:$0xff]
    %v266 = vld [vmem:[#allocation5 + $0x690] sm:$0xff]
    %v267 = vld [vmem:[#allocation5 + $0x698] sm:$0xff]
    %v268 = vld [vmem:[#allocation5 + $0x6a0] sm:$0xff]
    %v269 = vld [vmem:[#allocation5 + $0x6a8] sm:$0xff]
    %v270 = vld [vmem:[#allocation5 + $0x6b0] sm:$0xff]
    %v271 = vld [vmem:[#allocation5 + $0x6b8] sm:$0xff]
    %v272 = vld [vmem:[#allocation5 + $0x6c0] sm:$0xff]
    %v273 = vld [vmem:[#allocation5 + $0x6c8] sm:$0xff]
    %v274 = vld [vmem:[#allocation5 + $0x6d0] sm:$0xff]
    %v275 = vld [vmem:[#allocation5 + $0x6d8] sm:$0xff]
    %v276 = vld [vmem:[#allocation5 + $0x6e0] sm:$0xff]
    %v277 = vld [vmem:[#allocation5 + $0x6e8] sm:$0xff]
    %v278 = vld [vmem:[#allocation5 + $0x6f0] sm:$0xff]
    %v279 = vld [vmem:[#allocation5 + $0x6f8] sm:$0xff]
    %v280 = vld [vmem:[#allocation5 + $0x700] sm:$0xff]
    %v281 = vld [vmem:[#allocation5 + $0x708] sm:$0xff]
    %v282 = vld [vmem:[#allocation5 + $0x710] sm:$0xff]
    %v283 = vld [vmem:[#allocation5 + $0x718] sm:$0xff]
    %v284 = vld [vmem:[#allocation5 + $0x720] sm:$0xff]
    %v285 = vld [vmem:[#allocation5 + $0x728] sm:$0xff]
    %v286 = vld [vmem:[#allocation5 + $0x730] sm:$0xff]
    %v287 = vld [vmem:[#allocation5 + $0x738] sm:$0xff]
    %v288 = vld [vmem:[#allocation5 + $0x740] sm:$0xff]
    %v289 = vld [vmem:[#allocation5 + $0x748] sm:$0xff]
    %v290 = vld [vmem:[#allocation5 + $0x750] sm:$0xff]
    %v291 = vld [vmem:[#allocation5 + $0x758] sm:$0xff]
    %v292 = vld [vmem:[#allocation5 + $0x760] sm:$0xff]
    %v293 = vld [vmem:[#allocation5 + $0x768] sm:$0xff]
    %v294 = vld [vmem:[#allocation5 + $0x770] sm:$0xff]
    %v295 = vld [vmem:[#allocation5 + $0x778] sm:$0xff]
    %v296 = vld [vmem:[#allocation5 + $0x780] sm:$0xff]
    %v297 = vld [vmem:[#allocation5 + $0x788] sm:$0xff]
    %v298 = vld [vmem:[#allocation5 + $0x790] sm:$0xff]
    %v299 = vld [vmem:[#allocation5 + $0x798] sm:$0xff]
    %v300 = vld [vmem:[#allocation5 + $0x7a0] sm:$0xff]
    %v301 = vld [vmem:[#allocation5 + $0x7a8] sm:$0xff]
    %v302 = vld [vmem:[#allocation5 + $0x7b0] sm:$0xff]
    %v303 = vld [vmem:[#allocation5 + $0x7b8] sm:$0xff]
    %v304 = vld [vmem:[#allocation5 + $0x7c0] sm:$0xff]
    %v305 = vld [vmem:[#allocation5 + $0x7c8] sm:$0xff]
    %v306 = vld [vmem:[#allocation5 + $0x7d0] sm:$0xff]
    %v307 = vld [vmem:[#allocation5 + $0x7d8] sm:$0xff]
    %v308 = vld [vmem:[#allocation5 + $0x7e0] sm:$0xff]
    %v309 = vld [vmem:[#allocation5 + $0x7e8] sm:$0xff]
    %v310 = vld [vmem:[#allocation5 + $0x7f0] sm:$0xff]
    %v311 = vld [vmem:[#allocation5 + $0x7f8] sm:$0xff]
    %312 = vmatprep.subr.mxu0 %v117
    %313 = vmatpush1.msra.mxu0 %v116
    %314 = vmatprep.subr.mxu0 %v113
    %315 = vmatpush1.msra.mxu0 %v112
    %316 = vmatprep.subr.mxu0 %v109
    %317 = vmatpush1.msra.mxu0 %v108
    %318 = vmatprep.subr.mxu0 %v105
    %319 = vmatpush1.msra.mxu0 %v104
    %320 = vmatprep.subr.mxu0 %v101
    %321 = vmatpush1.msra.mxu0 %v100
    %322 = vmatprep.subr.mxu0 %v97
    %323 = vmatpush1.msra.mxu0 %v96
    %324 = vmatprep.subr.mxu0 %v93
    %325 = vmatpush1.msra.mxu0 %v92
    %326 = vmatprep.subr.mxu0 %v89
    %327 = vmatpush1.msra.mxu0 %v88
    %328 = vmatprep.subr.mxu0 %v85
    %329 = vmatpush1.msra.mxu0 %v84
    %330 = vmatprep.subr.mxu0 %v81
    %331 = vmatpush1.msra.mxu0 %v80
    %332 = vmatprep.subr.mxu0 %v77
    %333 = vmatpush1.msra.mxu0 %v76
    %334 = vmatprep.subr.mxu0 %v73
    %335 = vmatpush1.msra.mxu0 %v72
    %336 = vmatprep.subr.mxu0 %v69
    %337 = vmatpush1.msra.mxu0 %v68
    %338 = vmatprep.subr.mxu0 %v65
    %339 = vmatpush1.msra.mxu0 %v64
    %340 = vmatprep.subr.mxu0 %v61
    %341 = vmatpush1.msra.mxu0 %v60
    %342 = vmatprep.subr.mxu0 %v57
    %343 = vmatpush1.msra.mxu0 %v56
    %344 = vmatprep.subr.mxu0 %v181
    %345 = vmatpush2.msra.mxu0 %v180
    %346 = vmatprep.subr.mxu0 %v177
    %347 = vmatpush2.msra.mxu0 %v176
    %348 = vmatprep.subr.mxu0 %v173
    %349 = vmatpush2.msra.mxu0 %v172
    %350 = vmatprep.subr.mxu0 %v169
    %351 = vmatpush2.msra.mxu0 %v168
    %352 = vmatprep.subr.mxu0 %v165
    %353 = vmatpush2.msra.mxu0 %v164
    %354 = vmatprep.subr.mxu0 %v161
    %355 = vmatpush2.msra.mxu0 %v160
    %356 = vmatprep.subr.mxu0 %v157
    %357 = vmatpush2.msra.mxu0 %v156
    %358 = vmatprep.subr.mxu0 %v153
    %359 = vmatpush2.msra.mxu0 %v152
    %360 = vmatprep.subr.mxu0 %v149
    %361 = vmatpush2.msra.mxu0 %v148
    %362 = vmatprep.subr.mxu0 %v145
    %363 = vmatpush2.msra.mxu0 %v144
    %364 = vmatprep.subr.mxu0 %v141
    %365 = vmatpush2.msra.mxu0 %v140
    %366 = vmatprep.subr.mxu0 %v137
    %367 = vmatpush2.msra.mxu0 %v136
    %368 = vmatprep.subr.mxu0 %v133
    %369 = vmatpush2.msra.mxu0 %v132
    %370 = vmatprep.subr.mxu0 %v129
    %371 = vmatpush2.msra.mxu0 %v128
    %372 = vmatprep.subr.mxu0 %v125
    %373 = vmatpush2.msra.mxu0 %v124
    %374 = vmatprep.subr.mxu0 %v121
    %375 = vmatpush2.msra.mxu0 %v120
    %376 = vmatprep.mubr.f32.mxu0 %v53
    %377 = vmatmul.mubr.f32.gmra.mxu0 %v52
    %v378 = vpop.f32.mrf.mxu0
    %v379 = vadd.f32 0.0, %v378
    %v380 = vpop.f32.mrf.mxu0
    %v381 = vadd.f32 0.0, %v380
    %382 = vdwg.mxu0
    %383 = vmatprep.subr.mxu0 %v245
    %384 = vmatpush1.msra.mxu0 %v244
    %385 = vmatprep.subr.mxu0 %v241
    %386 = vmatpush1.msra.mxu0 %v240
    %387 = vmatprep.subr.mxu0 %v237
    %388 = vmatpush1.msra.mxu0 %v236
    %389 = vmatprep.subr.mxu0 %v233
    %390 = vmatpush1.msra.mxu0 %v232
    %391 = vmatprep.subr.mxu0 %v229
    %392 = vmatpush1.msra.mxu0 %v228
    %393 = vmatprep.subr.mxu0 %v225
    %394 = vmatpush1.msra.mxu0 %v224
    %395 = vmatprep.subr.mxu0 %v221
    %396 = vmatpush1.msra.mxu0 %v220
    %397 = vmatprep.subr.mxu0 %v217
    %398 = vmatpush1.msra.mxu0 %v216
    %399 = vmatprep.subr.mxu0 %v213
    %400 = vmatpush1.msra.mxu0 %v212
    %401 = vmatprep.subr.mxu0 %v209
    %402 = vmatpush1.msra.mxu0 %v208
    %403 = vmatprep.subr.mxu0 %v205
    %404 = vmatpush1.msra.mxu0 %v204
    %405 = vmatprep.subr.mxu0 %v201
    %406 = vmatpush1.msra.mxu0 %v200
    %407 = vmatprep.subr.mxu0 %v197
    %408 = vmatpush1.msra.mxu0 %v196
    %409 = vmatprep.subr.mxu0 %v193
    %410 = vmatpush1.msra.mxu0 %v192
    %411 = vmatprep.subr.mxu0 %v189
    %412 = vmatpush1.msra.mxu0 %v188
    %413 = vmatprep.subr.mxu0 %v185
    %414 = vmatpush1.msra.mxu0 %v184
    %415 = vmatprep.subr.mxu0 %v309
    %416 = vmatpush2.msra.mxu0 %v308
    %417 = vmatprep.subr.mxu0 %v305
    %418 = vmatpush2.msra.mxu0 %v304
    %419 = vmatprep.subr.mxu0 %v301
    %420 = vmatpush2.msra.mxu0 %v300
    %421 = vmatprep.subr.mxu0 %v297
    %422 = vmatpush2.msra.mxu0 %v296
    %423 = vmatprep.subr.mxu0 %v293
    %424 = vmatpush2.msra.mxu0 %v292
    %425 = vmatprep.subr.mxu0 %v289
    %426 = vmatpush2.msra.mxu0 %v288
    %427 = vmatprep.subr.mxu0 %v285
    %428 = vmatpush2.msra.mxu0 %v284
    %429 = vmatprep.subr.mxu0 %v281
    %430 = vmatpush2.msra.mxu0 %v280
    %431 = vmatprep.subr.mxu0 %v277
    %432 = vmatpush2.msra.mxu0 %v276
    %433 = vmatprep.subr.mxu0 %v273
    %434 = vmatpush2.msra.mxu0 %v272
    %435 = vmatprep.subr.mxu0 %v269
    %436 = vmatpush2.msra.mxu0 %v268
    %437 = vmatprep.subr.mxu0 %v265
    %438 = vmatpush2.msra.mxu0 %v264
    %439 = vmatprep.subr.mxu0 %v261
    %440 = vmatpush2.msra.mxu0 %v260
    %441 = vmatprep.subr.mxu0 %v257
    %442 = vmatpush2.msra.mxu0 %v256
    %443 = vmatprep.subr.mxu0 %v253
    %444 = vmatpush2.msra.mxu0 %v252
    %445 = vmatprep.subr.mxu0 %v249
    %446 = vmatpush2.msra.mxu0 %v248
    %447 = vmatprep.mubr.f32.mxu0 %v55
    %448 = vmatmul.mubr.f32.gmra.mxu0 %v54
    %v449 = vpop.f32.mrf.mxu0
    %v450 = vadd.f32 %v379, %v449
    %v451 = vpop.f32.mrf.mxu0
    %v452 = vadd.f32 %v381, %v451
    %453 = vdwg.mxu0
    %454 = vmatprep.subr.mxu0 %v119
    %455 = vmatpush1.msra.mxu0 %v118
    %456 = vmatprep.subr.mxu0 %v115
    %457 = vmatpush1.msra.mxu0 %v114
    %458 = vmatprep.subr.mxu0 %v111
    %459 = vmatpush1.msra.mxu0 %v110
    %460 = vmatprep.subr.mxu0 %v107
    %461 = vmatpush1.msra.mxu0 %v106
    %462 = vmatprep.subr.mxu0 %v103
    %463 = vmatpush1.msra.mxu0 %v102
    %464 = vmatprep.subr.mxu0 %v99
    %465 = vmatpush1.msra.mxu0 %v98
    %466 = vmatprep.subr.mxu0 %v95
    %467 = vmatpush1.msra.mxu0 %v94
    %468 = vmatprep.subr.mxu0 %v91
    %469 = vmatpush1.msra.mxu0 %v90
    %470 = vmatprep.subr.mxu0 %v87
    %471 = vmatpush1.msra.mxu0 %v86
    %472 = vmatprep.subr.mxu0 %v83
    %473 = vmatpush1.msra.mxu0 %v82
    %474 = vmatprep.subr.mxu0 %v79
    %475 = vmatpush1.msra.mxu0 %v78
    %476 = vmatprep.subr.mxu0 %v75
    %477 = vmatpush1.msra.mxu0 %v74
    %478 = vmatprep.subr.mxu0 %v71
    %479 = vmatpush1.msra.mxu0 %v70
    %480 = vmatprep.subr.mxu0 %v67
    %481 = vmatpush1.msra.mxu0 %v66
    %482 = vmatprep.subr.mxu0 %v63
    %483 = vmatpush1.msra.mxu0 %v62
    %484 = vmatprep.subr.mxu0 %v59
    %485 = vmatpush1.msra.mxu0 %v58
    %486 = vmatprep.subr.mxu0 %v183
    %487 = vmatpush2.msra.mxu0 %v182
    %488 = vmatprep.subr.mxu0 %v179
    %489 = vmatpush2.msra.mxu0 %v178
    %490 = vmatprep.subr.mxu0 %v175
    %491 = vmatpush2.msra.mxu0 %v174
    %492 = vmatprep.subr.mxu0 %v171
    %493 = vmatpush2.msra.mxu0 %v170
    %494 = vmatprep.subr.mxu0 %v167
    %495 = vmatpush2.msra.mxu0 %v166
    %496 = vmatprep.subr.mxu0 %v163
    %497 = vmatpush2.msra.mxu0 %v162
    %498 = vmatprep.subr.mxu0 %v159
    %499 = vmatpush2.msra.mxu0 %v158
    %500 = vmatprep.subr.mxu0 %v155
    %501 = vmatpush2.msra.mxu0 %v154
    %502 = vmatprep.subr.mxu0 %v151
    %503 = vmatpush2.msra.mxu0 %v150
    %504 = vmatprep.subr.mxu0 %v147
    %505 = vmatpush2.msra.mxu0 %v146
    %506 = vmatprep.subr.mxu0 %v143
    %507 = vmatpush2.msra.mxu0 %v142
    %508 = vmatprep.subr.mxu0 %v139
    %509 = vmatpush2.msra.mxu0 %v138
    %510 = vmatprep.subr.mxu0 %v135
    %511 = vmatpush2.msra.mxu0 %v134
    %512 = vmatprep.subr.mxu0 %v131
    %513 = vmatpush2.msra.mxu0 %v130
    %514 = vmatprep.subr.mxu0 %v127
    %515 = vmatpush2.msra.mxu0 %v126
    %516 = vmatprep.subr.mxu0 %v123
    %517 = vmatpush2.msra.mxu0 %v122
    %518 = vmatprep.mubr.f32.mxu0 %v53
    %519 = vmatmul.mubr.f32.gmra.mxu0 %v52
    %v520 = vpop.f32.mrf.mxu0
    %v521 = vadd.f32 0.0, %v520
    %v522 = vpop.f32.mrf.mxu0
    %v523 = vadd.f32 0.0, %v522
    %524 = vdwg.mxu0
    %525 = vmatprep.subr.mxu0 %v247
    %526 = vmatpush1.msra.mxu0 %v246
    %527 = vmatprep.subr.mxu0 %v243
    %528 = vmatpush1.msra.mxu0 %v242
    %529 = vmatprep.subr.mxu0 %v239
    %530 = vmatpush1.msra.mxu0 %v238
    %531 = vmatprep.subr.mxu0 %v235
    %532 = vmatpush1.msra.mxu0 %v234
    %533 = vmatprep.subr.mxu0 %v231
    %534 = vmatpush1.msra.mxu0 %v230
    %535 = vmatprep.subr.mxu0 %v227
    %536 = vmatpush1.msra.mxu0 %v226
    %537 = vmatprep.subr.mxu0 %v223
    %538 = vmatpush1.msra.mxu0 %v222
    %539 = vmatprep.subr.mxu0 %v219
    %540 = vmatpush1.msra.mxu0 %v218
    %541 = vmatprep.subr.mxu0 %v215
    %542 = vmatpush1.msra.mxu0 %v214
    %543 = vmatprep.subr.mxu0 %v211
    %544 = vmatpush1.msra.mxu0 %v210
    %545 = vmatprep.subr.mxu0 %v207
    %546 = vmatpush1.msra.mxu0 %v206
    %547 = vmatprep.subr.mxu0 %v203
    %548 = vmatpush1.msra.mxu0 %v202
    %549 = vmatprep.subr.mxu0 %v199
    %550 = vmatpush1.msra.mxu0 %v198
    %551 = vmatprep.subr.mxu0 %v195
    %552 = vmatpush1.msra.mxu0 %v194
    %553 = vmatprep.subr.mxu0 %v191
    %554 = vmatpush1.msra.mxu0 %v190
    %555 = vmatprep.subr.mxu0 %v187
    %556 = vmatpush1.msra.mxu0 %v186
    %557 = vmatprep.subr.mxu0 %v311
    %558 = vmatpush2.msra.mxu0 %v310
    %559 = vmatprep.subr.mxu0 %v307
    %560 = vmatpush2.msra.mxu0 %v306
    %561 = vmatprep.subr.mxu0 %v303
    %562 = vmatpush2.msra.mxu0 %v302
    %563 = vmatprep.subr.mxu0 %v299
    %564 = vmatpush2.msra.mxu0 %v298
    %565 = vmatprep.subr.mxu0 %v295
    %566 = vmatpush2.msra.mxu0 %v294
    %567 = vmatprep.subr.mxu0 %v291
    %568 = vmatpush2.msra.mxu0 %v290
    %569 = vmatprep.subr.mxu0 %v287
    %570 = vmatpush2.msra.mxu0 %v286
    %571 = vmatprep.subr.mxu0 %v283
    %572 = vmatpush2.msra.mxu0 %v282
    %573 = vmatprep.subr.mxu0 %v279
    %574 = vmatpush2.msra.mxu0 %v278
    %575 = vmatprep.subr.mxu0 %v275
    %576 = vmatpush2.msra.mxu0 %v274
    %577 = vmatprep.subr.mxu0 %v271
    %578 = vmatpush2.msra.mxu0 %v270
    %579 = vmatprep.subr.mxu0 %v267
    %580 = vmatpush2.msra.mxu0 %v266
    %581 = vmatprep.subr.mxu0 %v263
    %582 = vmatpush2.msra.mxu0 %v262
    %583 = vmatprep.subr.mxu0 %v259
    %584 = vmatpush2.msra.mxu0 %v258
    %585 = vmatprep.subr.mxu0 %v255
    %586 = vmatpush2.msra.mxu0 %v254
    %587 = vmatprep.subr.mxu0 %v251
    %588 = vmatpush2.msra.mxu0 %v250
    %589 = vmatprep.mubr.f32.mxu0 %v55
    %590 = vmatmul.mubr.f32.gmra.mxu0 %v54
    %v591 = vpop.f32.mrf.mxu0
    %v592 = vadd.f32 %v521, %v591
    %v593 = vpop.f32.mrf.mxu0
    %v594 = vadd.f32 %v523, %v593
    %595 = vdwg.mxu0
    %v596 = vld [vmem:[#allocation7] sm:$0xff]
    %v597 = vld [vmem:[#allocation7 + $0x8] sm:$0xff]
    %v598 = vld [vmem:[#allocation7 + $0x10] sm:$0xff]
    %v599 = vld [vmem:[#allocation7 + $0x18] sm:$0xff]
    %v600 = vmul.f32 %v450, %v596
    %v601 = vmul.f32 %v452, %v597
    %v602 = vmul.f32 %v592, %v598
    %v603 = vmul.f32 %v594, %v599
    %604 = vst [vmem:[#allocation8] sm:$0xff] %v600
    %605 = vst [vmem:[#allocation8 + $0x8] sm:$0xff] %v601
    %606 = vst [vmem:[#allocation8 + $0x10] sm:$0xff] %v602
    %607 = vst [vmem:[#allocation8 + $0x18] sm:$0xff] %v603
    // Predicated region
    $region26: #{tpu_custom_call.1} parent=1 // pred_check
      _
    $region27: #{tpu_custom_call.1} parent=1 // pred_check_branch
      %609 = sbr.rel (0) target = $region29
    $region28: #{tpu_custom_call.1} parent=1 // pred_region
      %s611 = ssub.s32 512, 512
      %612 = vsyncadd [#allocation4], %s611
      %s614 = sshll.u32 [#allocation8], 4
      %s615 = int_to_ptr.vmem [resolvable:$true] %s614
      %617 = dma.vmem_to_hbm [thread:$0]  %s615, 512, %s3, [#allocation4]
    $region29: #{tpu_custom_call.1} parent=1 // pred_fallthru
      _
    // Predicated region
    $region30: #{tpu_custom_call.1} parent=1 // pred_check
      _
    $region31: #{tpu_custom_call.1} parent=1 // pred_check_branch
      %619 = sbr.rel (0) target = $region33
    $region32: #{tpu_custom_call.1} parent=1 // pred_region
      %620 = dma.done [#allocation4], 512
    $region33: #{tpu_custom_call.1} parent=1 // pred_fallthru
      _
    %621 = vsyncpa [#allocation3], 1
    %622 = vsyncpa [#allocation6], 1
    %623 = vsyncpa [#allocation4], 1

</llo_original>
